<compile_context>
chip_gen: v7x
topology: tpu7x:2x2x1
jax: 0.10.0
libtpu: 0.0.40
codegen_flags: <defaults>
</compile_context>

<pallas_src>
import jax
import jax.numpy as jnp
from jax.experimental import pallas as pl
from jax.experimental.pallas import tpu as pltpu


def _round_up(x, m):
    return ((x + m - 1) // m) * m


def _classifier_kernel(x_ref,
                       w1_ref, b1_ref, w2_ref, b2_ref,
                       w3_ref, b3_ref, w4_ref, b4_ref,
                       o_ref):
    """One [tile_n, in_c] block of rows through the 4-layer MLP head."""

    def dense(h, w_ref, b_ref, relu):
        # Cast operands to the (possibly bf16) weight dtype for full-rate MXU;
        # accumulate in f32, keep bias-add / ReLU in f32 (VPU-friendly on v5e).
        y = jnp.dot(h.astype(w_ref.dtype), w_ref[...],
                    preferred_element_type=jnp.float32) + b_ref[...]
        return jnp.maximum(y, 0.0) if relu else y

    h = x_ref[...].astype(jnp.float32)
    h = dense(h, w1_ref, b1_ref, relu=True)
    h = dense(h, w2_ref, b2_ref, relu=True)
    h = dense(h, w3_ref, b3_ref, relu=True)
    o_ref[...] = dense(h, w4_ref, b4_ref, relu=False).astype(o_ref.dtype)


def classifier_forward(x, params, *, tile_n=512, use_bf16=False,
                       vmem_limit_bytes=32 * 1024 * 1024):
    """Pallas forward. x: [N, in_c] f32 -> [N, 1] f32."""
    n, in_c = x.shape
    h0 = params["w1"].shape[1]
    h1 = params["w2"].shape[1]
    h2 = params["w3"].shape[1]
    out_c = params["w4"].shape[1]

    # Row tile: multiple of 8 sublanes, no bigger than the (rounded-up) input.
    tile_n = max(8, min(tile_n, _round_up(n, 8)))
    n_pad = _round_up(n, tile_n)
    if n_pad != n:
        x = jnp.pad(x, ((0, n_pad - n), (0, 0)))

    # bf16 dot operands (v6e/v7x MXU win); biases stay f32.
    wdt = jnp.bfloat16 if use_bf16 else jnp.float32
    w1 = params["w1"].astype(wdt)
    w2 = params["w2"].astype(wdt)
    w3 = params["w3"].astype(wdt)
    w4 = params["w4"].astype(wdt)
    b1 = params["b1"].astype(jnp.float32)
    b2 = params["b2"].astype(jnp.float32)
    b3 = params["b3"].astype(jnp.float32)
    b4 = params["b4"].astype(jnp.float32)

    def full_spec(a):
        # Whole-array block, constant index map -> resident across grid steps.
        return pl.BlockSpec(a.shape, lambda i: (0, 0))

    grid = (n_pad // tile_n,)

    flops = 2 * n_pad * (in_c * h0 + h0 * h1 + h1 * h2 + h2 * out_c)
    bytes_accessed = (
        int(x.size) * x.dtype.itemsize
        + sum(int(a.size) * a.dtype.itemsize
              for a in (w1, w2, w3, w4, b1, b2, b3, b4))
        + n_pad * out_c * 4)
    cost = pl.CostEstimate(flops=flops, transcendentals=0,
                           bytes_accessed=bytes_accessed)

    out = pl.pallas_call(
        _classifier_kernel,
        out_shape=jax.ShapeDtypeStruct((n_pad, out_c), jnp.float32),
        grid=grid,
        in_specs=[pl.BlockSpec((tile_n, in_c), lambda i: (i, 0)),
                  full_spec(w1), full_spec(b1),
                  full_spec(w2), full_spec(b2),
                  full_spec(w3), full_spec(b3),
                  full_spec(w4), full_spec(b4)],
        out_specs=pl.BlockSpec((tile_n, out_c), lambda i: (i, 0)),
        compiler_params=pltpu.CompilerParams(
            dimension_semantics=("parallel",),
            vmem_limit_bytes=vmem_limit_bytes),
        cost_estimate=cost,
    )(x, w1, b1, w2, b2, w3, b3, w4, b4)

    return out[:n]


def init_params(key, in_channels, hidden_channels):
    """PyTorch-Linear-style init; weights stored [in, out], biases [1, out]."""
    def lin(k, fin, fout):
        kw, kb = jax.random.split(k)
        bound = 1.0 / jnp.sqrt(jnp.float32(fin))
        w = jax.random.uniform(kw, (fin, fout), jnp.float32, -bound, bound)
        b = jax.random.uniform(kb, (1, fout), jnp.float32, -bound, bound)
        return w, b

    h0, h1, h2 = hidden_channels
    k = jax.random.split(key, 4)
    w1, b1 = lin(k[0], in_channels, h0)
    w2, b2 = lin(k[1], h0, h1)
    w3, b3 = lin(k[2], h1, h2)
    w4, b4 = lin(k[3], h2, 1)
    return dict(w1=w1, b1=b1, w2=w2, b2=b2, w3=w3, b3=b3, w4=w4, b4=b4)


def reference(x, params):
    """Pure-JAX reference mirroring the PyTorch forward exactly."""
    h = jnp.maximum(x @ params["w1"] + params["b1"], 0.0)
    h = jnp.maximum(h @ params["w2"] + params["b2"], 0.0)
    h = jnp.maximum(h @ params["w3"] + params["b3"], 0.0)
    return h @ params["w4"] + params["b4"]


if __name__ == "__main__":
    # Small shapes consistent with the module (scaled-down hidden widths).
    IN_C = 32
    HIDDEN = (64, 32, 16)
    N = 48                      # not a multiple of the tile -> exercises padding

    key = jax.random.PRNGKey(0)
    k_param, k_x = jax.random.split(key)

    params = init_params(k_param, IN_C, HIDDEN)
    x = jax.random.normal(k_x, (N, IN_C), jnp.float32)

    # f32 MXU path (tight tolerance), small tile to exercise the grid.
    out = classifier_forward(x, params, tile_n=16, use_bf16=False)
    out = jax.block_until_ready(out)
    ref = reference(x, params)
    assert out.shape == (N, 1)
    assert jnp.allclose(out, ref, atol=1e-4, rtol=1e-4), "f32 mismatch vs reference"

    # bf16-operand MXU path (v6e/v7x optimization), looser tolerance.
    out_bf16 = classifier_forward(x, params, tile_n=16, use_bf16=True)
    out_bf16 = jax.block_until_ready(out_bf16)
    assert jnp.allclose(out_bf16, ref, atol=1e-1, rtol=1e-1), "bf16 mismatch vs reference"

    print("KERNEL_OK")
</pallas_src>

<mosaic_0001>
module attributes {stable_mosaic.version = 11 : i64} {
  func.func @_classifier_kernel(%arg0: i32, %arg1: memref<16x32xf32, #tpu.memory_space<vmem>>, %arg2: memref<32x64xf32, #tpu.memory_space<vmem>>, %arg3: memref<1x64xf32, #tpu.memory_space<vmem>>, %arg4: memref<64x32xf32, #tpu.memory_space<vmem>>, %arg5: memref<1x32xf32, #tpu.memory_space<vmem>>, %arg6: memref<32x16xf32, #tpu.memory_space<vmem>>, %arg7: memref<1x16xf32, #tpu.memory_space<vmem>>, %arg8: memref<16x1xf32, #tpu.memory_space<vmem>>, %arg9: memref<1x1xf32, #tpu.memory_space<vmem>>, %arg10: memref<16x1xf32, #tpu.memory_space<vmem>>) attributes {dimension_semantics = [#tpu.dimension_semantics<parallel>], iteration_bounds = array<i64: 3>, scalar_prefetch = 0 : i64, scratch_operands = 0 : i64, tpu.core_type = #tpu.core_type<tc>, window_params = [{transform_indices = @transform_0, window_bounds = array<i64: 16, 32>}, {pipeline_mode = #tpu.pipeline_mode<synchronous>, transform_indices = @transform_1, window_bounds = array<i64: 32, 64>}, {pipeline_mode = #tpu.pipeline_mode<synchronous>, transform_indices = @transform_2, window_bounds = array<i64: 1, 64>}, {pipeline_mode = #tpu.pipeline_mode<synchronous>, transform_indices = @transform_3, window_bounds = array<i64: 64, 32>}, {pipeline_mode = #tpu.pipeline_mode<synchronous>, transform_indices = @transform_4, window_bounds = array<i64: 1, 32>}, {pipeline_mode = #tpu.pipeline_mode<synchronous>, transform_indices = @transform_5, window_bounds = array<i64: 32, 16>}, {pipeline_mode = #tpu.pipeline_mode<synchronous>, transform_indices = @transform_6, window_bounds = array<i64: 1, 16>}, {pipeline_mode = #tpu.pipeline_mode<synchronous>, transform_indices = @transform_7, window_bounds = array<i64: 16, 1>}, {pipeline_mode = #tpu.pipeline_mode<synchronous>, transform_indices = @transform_8, window_bounds = array<i64: 1, 1>}, {transform_indices = @transform_9, window_bounds = array<i64: 16, 1>}]} {
    %c0 = arith.constant 0 : index
    %c0_0 = arith.constant 0 : index
    %0 = vector.load %arg1[%c0, %c0_0] : memref<16x32xf32, #tpu.memory_space<vmem>>, vector<16x32xf32>
    %c0_1 = arith.constant 0 : index
    %c0_2 = arith.constant 0 : index
    %1 = vector.load %arg2[%c0_1, %c0_2] : memref<32x64xf32, #tpu.memory_space<vmem>>, vector<32x64xf32>
    %cst = arith.constant dense<0.000000e+00> : vector<16x64xf32>
    %2 = tpu.matmul %0, %1, %cst {dimension_numbers = #tpu.dot_dimension_numbers<[1], [0], [0], [1], [0, 0, 1, 1], [], []>} : vector<16x32xf32>, vector<32x64xf32>, vector<16x64xf32> -> vector<16x64xf32>
    %c0_3 = arith.constant 0 : index
    %c0_4 = arith.constant 0 : index
    %3 = vector.load %arg3[%c0_3, %c0_4] : memref<1x64xf32, #tpu.memory_space<vmem>>, vector<1x64xf32>
    %4 = vector.broadcast %3 : vector<1x64xf32> to vector<16x64xf32>
    %5 = arith.addf %2, %4 : vector<16x64xf32>
    %cst_5 = arith.constant 0.000000e+00 : f32
    %6 = vector.broadcast %cst_5 : f32 to vector<16x64xf32>
    %7 = arith.maximumf %5, %6 : vector<16x64xf32>
    %c0_6 = arith.constant 0 : index
    %c0_7 = arith.constant 0 : index
    %8 = vector.load %arg4[%c0_6, %c0_7] : memref<64x32xf32, #tpu.memory_space<vmem>>, vector<64x32xf32>
    %cst_8 = arith.constant dense<0.000000e+00> : vector<16x32xf32>
    %9 = tpu.matmul %7, %8, %cst_8 {dimension_numbers = #tpu.dot_dimension_numbers<[1], [0], [0], [1], [0, 0, 1, 1], [], []>} : vector<16x64xf32>, vector<64x32xf32>, vector<16x32xf32> -> vector<16x32xf32>
    %c0_9 = arith.constant 0 : index
    %c0_10 = arith.constant 0 : index
    %10 = vector.load %arg5[%c0_9, %c0_10] : memref<1x32xf32, #tpu.memory_space<vmem>>, vector<1x32xf32>
    %11 = vector.broadcast %10 : vector<1x32xf32> to vector<16x32xf32>
    %12 = arith.addf %9, %11 : vector<16x32xf32>
    %cst_11 = arith.constant 0.000000e+00 : f32
    %13 = vector.broadcast %cst_11 : f32 to vector<16x32xf32>
    %14 = arith.maximumf %12, %13 : vector<16x32xf32>
    %c0_12 = arith.constant 0 : index
    %c0_13 = arith.constant 0 : index
    %15 = vector.load %arg6[%c0_12, %c0_13] : memref<32x16xf32, #tpu.memory_space<vmem>>, vector<32x16xf32>
    %cst_14 = arith.constant dense<0.000000e+00> : vector<16x16xf32>
    %16 = tpu.matmul %14, %15, %cst_14 {dimension_numbers = #tpu.dot_dimension_numbers<[1], [0], [0], [1], [0, 0, 1, 1], [], []>} : vector<16x32xf32>, vector<32x16xf32>, vector<16x16xf32> -> vector<16x16xf32>
    %c0_15 = arith.constant 0 : index
    %c0_16 = arith.constant 0 : index
    %17 = vector.load %arg7[%c0_15, %c0_16] : memref<1x16xf32, #tpu.memory_space<vmem>>, vector<1x16xf32>
    %18 = vector.broadcast %17 : vector<1x16xf32> to vector<16x16xf32>
    %19 = arith.addf %16, %18 : vector<16x16xf32>
    %cst_17 = arith.constant 0.000000e+00 : f32
    %20 = vector.broadcast %cst_17 : f32 to vector<16x16xf32>
    %21 = arith.maximumf %19, %20 : vector<16x16xf32>
    %c0_18 = arith.constant 0 : index
    %c0_19 = arith.constant 0 : index
    %22 = vector.load %arg8[%c0_18, %c0_19] : memref<16x1xf32, #tpu.memory_space<vmem>>, vector<16x1xf32>
    %cst_20 = arith.constant dense<0.000000e+00> : vector<16x1xf32>
    %23 = tpu.matmul %21, %22, %cst_20 {dimension_numbers = #tpu.dot_dimension_numbers<[1], [0], [0], [1], [0, 0, 1, 1], [], []>} : vector<16x16xf32>, vector<16x1xf32>, vector<16x1xf32> -> vector<16x1xf32>
    %c0_21 = arith.constant 0 : index
    %c0_22 = arith.constant 0 : index
    %24 = vector.load %arg9[%c0_21, %c0_22] : memref<1x1xf32, #tpu.memory_space<vmem>>, vector<1x1xf32>
    %25 = vector.broadcast %24 : vector<1x1xf32> to vector<16x1xf32>
    %26 = arith.addf %23, %25 : vector<16x1xf32>
    %c0_23 = arith.constant 0 : index
    %c0_24 = arith.constant 0 : index
    %27 = vector.load %arg10[%c0_23, %c0_24] : memref<16x1xf32, #tpu.memory_space<vmem>>, vector<16x1xf32>
    tpu.vector_store %arg10[%c0_23, %c0_24], %26 {strides = array<i32>} : memref<16x1xf32, #tpu.memory_space<vmem>>, vector<16x1xf32>,
    return
  }
  func.func @transform_0(%arg0: i32) -> (i32, i32) {
    %c0_i32 = arith.constant 0 : i32
    %c0_i32_0 = arith.constant 0 : i32
    return %arg0, %c0_i32 : i32, i32
  }
  func.func @transform_1(%arg0: i32) -> (i32, i32) {
    %c0_i32 = arith.constant 0 : i32
    %c0_i32_0 = arith.constant 0 : i32
    %c0_i32_1 = arith.constant 0 : i32
    return %c0_i32, %c0_i32_0 : i32, i32
  }
  func.func @transform_2(%arg0: i32) -> (i32, i32) {
    %c0_i32 = arith.constant 0 : i32
    %c0_i32_0 = arith.constant 0 : i32
    %c0_i32_1 = arith.constant 0 : i32
    return %c0_i32, %c0_i32_0 : i32, i32
  }
  func.func @transform_3(%arg0: i32) -> (i32, i32) {
    %c0_i32 = arith.constant 0 : i32
    %c0_i32_0 = arith.constant 0 : i32
    %c0_i32_1 = arith.constant 0 : i32
    return %c0_i32, %c0_i32_0 : i32, i32
  }
  func.func @transform_4(%arg0: i32) -> (i32, i32) {
    %c0_i32 = arith.constant 0 : i32
    %c0_i32_0 = arith.constant 0 : i32
    %c0_i32_1 = arith.constant 0 : i32
    return %c0_i32, %c0_i32_0 : i32, i32
  }
  func.func @transform_5(%arg0: i32) -> (i32, i32) {
    %c0_i32 = arith.constant 0 : i32
    %c0_i32_0 = arith.constant 0 : i32
    %c0_i32_1 = arith.constant 0 : i32
    return %c0_i32, %c0_i32_0 : i32, i32
  }
  func.func @transform_6(%arg0: i32) -> (i32, i32) {
    %c0_i32 = arith.constant 0 : i32
    %c0_i32_0 = arith.constant 0 : i32
    %c0_i32_1 = arith.constant 0 : i32
    return %c0_i32, %c0_i32_0 : i32, i32
  }
  func.func @transform_7(%arg0: i32) -> (i32, i32) {
    %c0_i32 = arith.constant 0 : i32
    %c0_i32_0 = arith.constant 0 : i32
    %c0_i32_1 = arith.constant 0 : i32
    return %c0_i32, %c0_i32_0 : i32, i32
  }
  func.func @transform_8(%arg0: i32) -> (i32, i32) {
    %c0_i32 = arith.constant 0 : i32
    %c0_i32_0 = arith.constant 0 : i32
    %c0_i32_1 = arith.constant 0 : i32
    return %c0_i32, %c0_i32_0 : i32, i32
  }
  func.func @transform_9(%arg0: i32) -> (i32, i32) {
    %c0_i32 = arith.constant 0 : i32
    %c0_i32_0 = arith.constant 0 : i32
    return %arg0, %c0_i32 : i32, i32
  }
}

</mosaic_0001>

<llo_original>
// kernel: tpu_custom_call.1
$region0: #{tpu_custom_call.1}
  #allocation0 [shape = 'u32[]', space=smem, size = 0x4, offset = 0x4, fixed_abs, tag = 'smem constant byte address 0x4 - core index']
  #allocation1 [shape = 'u32[144,128]{1,0:T(1,128)}', space=vmem, size = 0x12000, scoped, tag = 'internal scratch']
  #allocation2 [shape = 'f32[1,1]{1,0:T(1,128)S(1)}', space=vmem, size = 0x200, scoped, tag = 'scoped memory for tpu_custom_call.1']
  %s0 = inlined_call_operand.vmem [shape: f32[48,32], index: 0, kind: input, shape index: {}]
  %s1 = inlined_call_operand.vmem [shape: f32[32,64], index: 1, kind: input, shape index: {}]
  %s2 = inlined_call_operand.vmem [shape: f32[1,64], index: 2, kind: input, shape index: {}]
  %s3 = inlined_call_operand.vmem [shape: f32[64,32], index: 3, kind: input, shape index: {}]
  %s4 = inlined_call_operand.vmem [shape: f32[1,32], index: 4, kind: input, shape index: {}]
  %s5 = inlined_call_operand.vmem [shape: f32[32,16], index: 5, kind: input, shape index: {}]
  %s6 = inlined_call_operand.vmem [shape: f32[1,16], index: 6, kind: input, shape index: {}]
  %s7 = inlined_call_operand.vmem [shape: f32[16,1], index: 7, kind: input, shape index: {}]
  %s8 = inlined_call_operand.<no memory space> [shape: f32[1,1], index: 8, kind: input, shape index: {}]
  %s9 = inlined_call_operand.vmem [shape: f32[48,1], index: 9, kind: output, shape index: {}]
  %s10 = sld [smem:[#allocation0]]
  $region69: #{tpu_custom_call.1} parent=0
    _
  %s12 = ssub.s32 1, %s10
  %s13 = scalar_select 0, %s12, %s10
  %v14 = vstv %s8
  %15 = vst [vmem:[#allocation2] sm:$0x1] %v14
  loop: start=0, step=1, limit=5
  $region2: #{tpu_custom_call.1} parent=0 // loop_pre_header
    _
  $region3: #{tpu_custom_call.1} parent=0 // loop_header
    %s17 = sphi 0, %s21
    %p18 = scmp.ge.s32.totalorder %s17, 5
    %s27 = sphi 0, %s29
    %s30 = sphi 0, %s27
    %s31 = sphi 0, %s30
    %s47 = sphi 0, %s31
    %s51 = sphi 0, %s51
    %s53 = sphi 0, %s51
    %s54 = sphi 0, %s53
    %s68 = sphi 0, %s54
    %s72 = sphi 0, %s72
    %s74 = sphi 0, %s72
    %s75 = sphi 0, %s74
    %s89 = sphi 0, %s75
    %s93 = sphi 0, %s93
    %s95 = sphi 0, %s93
    %s96 = sphi 0, %s95
    %s110 = sphi 0, %s96
    %s114 = sphi 0, %s114
    %s116 = sphi 0, %s114
    %s117 = sphi 0, %s116
    %s131 = sphi 0, %s117
    %s135 = sphi 0, %s135
    %s137 = sphi 0, %s135
    %s138 = sphi 0, %s137
    %s152 = sphi 0, %s138
    %s156 = sphi 0, %s156
    %s158 = sphi 0, %s156
    %s159 = sphi 0, %s158
    %s173 = sphi 0, %s159
    %s177 = sphi 0, %s177
    %s179 = sphi 0, %s177
    %s180 = sphi 0, %s179
    %s194 = sphi 0, %s180
    %s198 = sphi 0, %s198
    %s200 = sphi 0, %s198
    %s201 = sphi 0, %s200
    %s215 = sphi 0, %s201
    %s221 = sphi 0, %s223
    %s224 = sphi 0, %s221
    %s225 = sphi 0, %s224
    %s241 = sphi 0, %s225
  $region4: #{tpu_custom_call.1} parent=0 // loop_header_branch
    %20 = sbr.rel (%p18) target = $region8
  $region5: #{tpu_custom_call.1} parent=0 // loop_body
    %s22 = ssub.s32 %s17, 1
    %s23 = ssub.s32 %s17, 2
    %s24 = sadd.s32 %s17, 1
    %s25 = ssub.s32 %s17, %s24
    %p26 = scmp.eq.s32.totalorder %s25, 0
    %s28 = sadd.s32 %s27, 1
    %s29 = scalar_select %p26, %s27, %s28
    %p32 = pneg %p26
    %p33 = scmp.eq.s32.totalorder %s17, 2
    %p34 = por %p32, %p33
    %p35 = scmp.ne.s32.totalorder %s27, %s30
    %p36 = scmp.eq.s32.totalorder %s17, 0
    %p37 = por %p35, %p36
    %p38 = scmp.ne.s32.totalorder %s27, %s30
    %p39 = scmp.eq.s32.totalorder %s22, 2
    %p40 = por %p38, %p39
    %p41 = scmp.ne.s32.totalorder %s30, %s31
    %p42 = scmp.eq.s32.totalorder %s22, 0
    %p43 = por %p41, %p42
    %p44 = scmp.ne.s32.totalorder %s30, %s31
    %p45 = scmp.eq.s32.totalorder %s23, 2
    %p46 = por %p44, %p45
    %p48 = scmp.ne.s32.totalorder %s31, %s47
    %p49 = scmp.eq.s32.totalorder %s23, 0
    %p50 = por %p48, %p49
    %s52 = sadd.s32 %s51, 1
    %p55 = scmp.eq.s32.totalorder %s17, 2
    %p56 = scmp.ne.s32.totalorder %s51, %s53
    %p57 = scmp.eq.s32.totalorder %s17, 0
    %p58 = por %p56, %p57
    %p59 = scmp.ne.s32.totalorder %s51, %s53
    %p60 = scmp.eq.s32.totalorder %s22, 2
    %p61 = por %p59, %p60
    %p62 = scmp.ne.s32.totalorder %s53, %s54
    %p63 = scmp.eq.s32.totalorder %s22, 0
    %p64 = por %p62, %p63
    %p65 = scmp.ne.s32.totalorder %s53, %s54
    %p66 = scmp.eq.s32.totalorder %s23, 2
    %p67 = por %p65, %p66
    %p69 = scmp.ne.s32.totalorder %s54, %s68
    %p70 = scmp.eq.s32.totalorder %s23, 0
    %p71 = por %p69, %p70
    %s73 = sadd.s32 %s72, 1
    %p76 = scmp.eq.s32.totalorder %s17, 2
    %p77 = scmp.ne.s32.totalorder %s72, %s74
    %p78 = scmp.eq.s32.totalorder %s17, 0
    %p79 = por %p77, %p78
    %p80 = scmp.ne.s32.totalorder %s72, %s74
    %p81 = scmp.eq.s32.totalorder %s22, 2
    %p82 = por %p80, %p81
    %p83 = scmp.ne.s32.totalorder %s74, %s75
    %p84 = scmp.eq.s32.totalorder %s22, 0
    %p85 = por %p83, %p84
    %p86 = scmp.ne.s32.totalorder %s74, %s75
    %p87 = scmp.eq.s32.totalorder %s23, 2
    %p88 = por %p86, %p87
    %p90 = scmp.ne.s32.totalorder %s75, %s89
    %p91 = scmp.eq.s32.totalorder %s23, 0
    %p92 = por %p90, %p91
    %s94 = sadd.s32 %s93, 1
    %p97 = scmp.eq.s32.totalorder %s17, 2
    %p98 = scmp.ne.s32.totalorder %s93, %s95
    %p99 = scmp.eq.s32.totalorder %s17, 0
    %p100 = por %p98, %p99
    %p101 = scmp.ne.s32.totalorder %s93, %s95
    %p102 = scmp.eq.s32.totalorder %s22, 2
    %p103 = por %p101, %p102
    %p104 = scmp.ne.s32.totalorder %s95, %s96
    %p105 = scmp.eq.s32.totalorder %s22, 0
    %p106 = por %p104, %p105
    %p107 = scmp.ne.s32.totalorder %s95, %s96
    %p108 = scmp.eq.s32.totalorder %s23, 2
    %p109 = por %p107, %p108
    %p111 = scmp.ne.s32.totalorder %s96, %s110
    %p112 = scmp.eq.s32.totalorder %s23, 0
    %p113 = por %p111, %p112
    %s115 = sadd.s32 %s114, 1
    %p118 = scmp.eq.s32.totalorder %s17, 2
    %p119 = scmp.ne.s32.totalorder %s114, %s116
    %p120 = scmp.eq.s32.totalorder %s17, 0
    %p121 = por %p119, %p120
    %p122 = scmp.ne.s32.totalorder %s114, %s116
    %p123 = scmp.eq.s32.totalorder %s22, 2
    %p124 = por %p122, %p123
    %p125 = scmp.ne.s32.totalorder %s116, %s117
    %p126 = scmp.eq.s32.totalorder %s22, 0
    %p127 = por %p125, %p126
    %p128 = scmp.ne.s32.totalorder %s116, %s117
    %p129 = scmp.eq.s32.totalorder %s23, 2
    %p130 = por %p128, %p129
    %p132 = scmp.ne.s32.totalorder %s117, %s131
    %p133 = scmp.eq.s32.totalorder %s23, 0
    %p134 = por %p132, %p133
    %s136 = sadd.s32 %s135, 1
    %p139 = scmp.eq.s32.totalorder %s17, 2
    %p140 = scmp.ne.s32.totalorder %s135, %s137
    %p141 = scmp.eq.s32.totalorder %s17, 0
    %p142 = por %p140, %p141
    %p143 = scmp.ne.s32.totalorder %s135, %s137
    %p144 = scmp.eq.s32.totalorder %s22, 2
    %p145 = por %p143, %p144
    %p146 = scmp.ne.s32.totalorder %s137, %s138
    %p147 = scmp.eq.s32.totalorder %s22, 0
    %p148 = por %p146, %p147
    %p149 = scmp.ne.s32.totalorder %s137, %s138
    %p150 = scmp.eq.s32.totalorder %s23, 2
    %p151 = por %p149, %p150
    %p153 = scmp.ne.s32.totalorder %s138, %s152
    %p154 = scmp.eq.s32.totalorder %s23, 0
    %p155 = por %p153, %p154
    %s157 = sadd.s32 %s156, 1
    %p160 = scmp.eq.s32.totalorder %s17, 2
    %p161 = scmp.ne.s32.totalorder %s156, %s158
    %p162 = scmp.eq.s32.totalorder %s17, 0
    %p163 = por %p161, %p162
    %p164 = scmp.ne.s32.totalorder %s156, %s158
    %p165 = scmp.eq.s32.totalorder %s22, 2
    %p166 = por %p164, %p165
    %p167 = scmp.ne.s32.totalorder %s158, %s159
    %p168 = scmp.eq.s32.totalorder %s22, 0
    %p169 = por %p167, %p168
    %p170 = scmp.ne.s32.totalorder %s158, %s159
    %p171 = scmp.eq.s32.totalorder %s23, 2
    %p172 = por %p170, %p171
    %p174 = scmp.ne.s32.totalorder %s159, %s173
    %p175 = scmp.eq.s32.totalorder %s23, 0
    %p176 = por %p174, %p175
    %s178 = sadd.s32 %s177, 1
    %p181 = scmp.eq.s32.totalorder %s17, 2
    %p182 = scmp.ne.s32.totalorder %s177, %s179
    %p183 = scmp.eq.s32.totalorder %s17, 0
    %p184 = por %p182, %p183
    %p185 = scmp.ne.s32.totalorder %s177, %s179
    %p186 = scmp.eq.s32.totalorder %s22, 2
    %p187 = por %p185, %p186
    %p188 = scmp.ne.s32.totalorder %s179, %s180
    %p189 = scmp.eq.s32.totalorder %s22, 0
    %p190 = por %p188, %p189
    %p191 = scmp.ne.s32.totalorder %s179, %s180
    %p192 = scmp.eq.s32.totalorder %s23, 2
    %p193 = por %p191, %p192
    %p195 = scmp.ne.s32.totalorder %s180, %s194
    %p196 = scmp.eq.s32.totalorder %s23, 0
    %p197 = por %p195, %p196
    %s199 = sadd.s32 %s198, 1
    %p202 = scmp.eq.s32.totalorder %s17, 2
    %p203 = scmp.ne.s32.totalorder %s198, %s200
    %p204 = scmp.eq.s32.totalorder %s17, 0
    %p205 = por %p203, %p204
    %p206 = scmp.ne.s32.totalorder %s198, %s200
    %p207 = scmp.eq.s32.totalorder %s22, 2
    %p208 = por %p206, %p207
    %p209 = scmp.ne.s32.totalorder %s200, %s201
    %p210 = scmp.eq.s32.totalorder %s22, 0
    %p211 = por %p209, %p210
    %p212 = scmp.ne.s32.totalorder %s200, %s201
    %p213 = scmp.eq.s32.totalorder %s23, 2
    %p214 = por %p212, %p213
    %p216 = scmp.ne.s32.totalorder %s201, %s215
    %p217 = scmp.eq.s32.totalorder %s23, 0
    %p218 = por %p216, %p217
    %s219 = ssub.s32 %s17, %s24
    %p220 = scmp.eq.s32.totalorder %s219, 0
    %s222 = sadd.s32 %s221, 1
    %s223 = scalar_select %p220, %s221, %s222
    %p226 = pneg %p220
    %p227 = scmp.eq.s32.totalorder %s17, 2
    %p228 = por %p226, %p227
    %p229 = scmp.ne.s32.totalorder %s221, %s224
    %p230 = scmp.eq.s32.totalorder %s17, 0
    %p231 = por %p229, %p230
    %p232 = scmp.ne.s32.totalorder %s221, %s224
    %p233 = scmp.eq.s32.totalorder %s22, 2
    %p234 = por %p232, %p233
    %p235 = scmp.ne.s32.totalorder %s224, %s225
    %p236 = scmp.eq.s32.totalorder %s22, 0
    %p237 = por %p235, %p236
    %p238 = scmp.ne.s32.totalorder %s224, %s225
    %p239 = scmp.eq.s32.totalorder %s23, 2
    %p240 = por %p238, %p239
    %p242 = scmp.ne.s32.totalorder %s225, %s241
    %p243 = scmp.eq.s32.totalorder %s23, 0
    %p244 = por %p242, %p243
    %p245 = scmp.le.s32.totalorder 1, %s17
    %p246 = scmp.lt.s32.totalorder %s17, 4
    %p247 = pnand %p245, %p246
    %p248 = pneg %p247
    // Predicated region
    $region9: #{tpu_custom_call.1} parent=5 // pred_check
      _
    $region10: #{tpu_custom_call.1} parent=5 // pred_check_branch
      %250 = sbr.rel (%p247) target = $region12
    $region11: #{tpu_custom_call.1} parent=5 // pred_region
      %s251 = ssub.s32 %s17, 1
      // Predicated region
      $region13: #{tpu_custom_call.1} parent=11 // pred_check
        %p252 = pneg %p64
      $region14: #{tpu_custom_call.1} parent=11 // pred_check_branch
        %254 = sbr.rel (%p252) target = $region16
      $region15: #{tpu_custom_call.1} parent=11 // pred_region
        _
      $region16: #{tpu_custom_call.1} parent=11 // pred_fallthru
        _
      // Predicated region
      $region17: #{tpu_custom_call.1} parent=11 // pred_check
        %p255 = pneg %p85
      $region18: #{tpu_custom_call.1} parent=11 // pred_check_branch
        %257 = sbr.rel (%p255) target = $region20
      $region19: #{tpu_custom_call.1} parent=11 // pred_region
        _
      $region20: #{tpu_custom_call.1} parent=11 // pred_fallthru
        _
      // Predicated region
      $region21: #{tpu_custom_call.1} parent=11 // pred_check
        %p258 = pneg %p106
      $region22: #{tpu_custom_call.1} parent=11 // pred_check_branch
        %260 = sbr.rel (%p258) target = $region24
      $region23: #{tpu_custom_call.1} parent=11 // pred_region
        _
      $region24: #{tpu_custom_call.1} parent=11 // pred_fallthru
        _
      // Predicated region
      $region25: #{tpu_custom_call.1} parent=11 // pred_check
        %p261 = pneg %p127
      $region26: #{tpu_custom_call.1} parent=11 // pred_check_branch
        %263 = sbr.rel (%p261) target = $region28
      $region27: #{tpu_custom_call.1} parent=11 // pred_region
        _
      $region28: #{tpu_custom_call.1} parent=11 // pred_fallthru
        _
      // Predicated region
      $region29: #{tpu_custom_call.1} parent=11 // pred_check
        %p264 = pneg %p148
      $region30: #{tpu_custom_call.1} parent=11 // pred_check_branch
        %266 = sbr.rel (%p264) target = $region32
      $region31: #{tpu_custom_call.1} parent=11 // pred_region
        _
      $region32: #{tpu_custom_call.1} parent=11 // pred_fallthru
        _
      // Predicated region
      $region33: #{tpu_custom_call.1} parent=11 // pred_check
        %p267 = pneg %p169
      $region34: #{tpu_custom_call.1} parent=11 // pred_check_branch
        %269 = sbr.rel (%p267) target = $region36
      $region35: #{tpu_custom_call.1} parent=11 // pred_region
        _
      $region36: #{tpu_custom_call.1} parent=11 // pred_fallthru
        _
      // Predicated region
      $region37: #{tpu_custom_call.1} parent=11 // pred_check
        %p270 = pneg %p190
      $region38: #{tpu_custom_call.1} parent=11 // pred_check_branch
        %272 = sbr.rel (%p270) target = $region40
      $region39: #{tpu_custom_call.1} parent=11 // pred_region
        _
      $region40: #{tpu_custom_call.1} parent=11 // pred_fallthru
        _
      // Predicated region
      $region41: #{tpu_custom_call.1} parent=11 // pred_check
        %p273 = pneg %p211
      $region42: #{tpu_custom_call.1} parent=11 // pred_check_branch
        %275 = sbr.rel (%p273) target = $region44
      $region43: #{tpu_custom_call.1} parent=11 // pred_region
        _
      $region44: #{tpu_custom_call.1} parent=11 // pred_fallthru
        _
    $region12: #{tpu_custom_call.1} parent=5 // pred_fallthru
      _
    %p276 = scmp.lt.s32.totalorder %s17, 3
    // Predicated region
    $region45: #{tpu_custom_call.1} parent=5 // pred_check
      %p277 = pneg %p276
    $region46: #{tpu_custom_call.1} parent=5 // pred_check_branch
      %279 = sbr.rel (%p277) target = $region48
    $region47: #{tpu_custom_call.1} parent=5 // pred_region
      // Predicated region
      $region49: #{tpu_custom_call.1} parent=47 // pred_check
        %p280 = pneg %p37
      $region50: #{tpu_custom_call.1} parent=47 // pred_check_branch
        %282 = sbr.rel (%p280) target = $region52
      $region51: #{tpu_custom_call.1} parent=47 // pred_region
        %s283 = smul.u32 2, %s17
        %p284 = scmp.lt.s32.totalorder %s283, 5
        %s285 = scalar_select %p284, %s283, 5
        %s286 = smul.addr %s285, 8
        %s287 = scalar_lea.vmem %s0, %s286
        %s288 = smul.u32 2, %s17
      $region52: #{tpu_custom_call.1} parent=47 // pred_fallthru
        _
    $region48: #{tpu_custom_call.1} parent=5 // pred_fallthru
      _
    %p289 = scmp.le.s32.totalorder 1, %s17
    %p290 = scmp.lt.s32.totalorder %s17, 4
    %p291 = pnand %p289, %p290
    %p292 = pneg %p291
    // Predicated region
    $region53: #{tpu_custom_call.1} parent=5 // pred_check
      _
    $region54: #{tpu_custom_call.1} parent=5 // pred_check_branch
      %294 = sbr.rel (%p291) target = $region56
    $region55: #{tpu_custom_call.1} parent=5 // pred_region
      %s295 = ssub.s32 %s17, 1
      %s296 = smul.u32 2, %s22
      %p297 = scmp.lt.s32.totalorder %s296, 5
      %s298 = scalar_select %p297, %s296, 5
      %s299 = smul.addr %s298, 8
      %s300 = scalar_lea.vmem %s0, %s299
      %p301 = pneg %p43
      %p302 = pneg %p40
      %p303 = pneg %p64
      %p304 = pneg %p61
      %p305 = pneg %p85
      %p306 = pneg %p82
      %p307 = pneg %p106
      %p308 = pneg %p103
      %p309 = pneg %p127
      %p310 = pneg %p124
      %p311 = pneg %p148
      %p312 = pneg %p145
      %p313 = pneg %p169
      %p314 = pneg %p166
      %p315 = pneg %p190
      %p316 = pneg %p187
      %p317 = pneg %p211
      %p318 = pneg %p208
      %p319 = pneg %p237
      %p320 = pneg %p234
      %s321 = smul.u32 2, %s22
      %p322 = scmp.lt.s32.totalorder %s321, 5
      %s323 = scalar_select %p322, %s321, 5
      %s324 = smul.addr %s323, 8
      %s325 = scalar_lea.vmem %s9, %s324
      %s326 = smul.u32 2, %s22
      %p327 = scmp.lt.s32.totalorder %s326, 5
      %s328 = scalar_select %p327, %s326, 5
      %s329 = smul.addr %s328, 8
      %s330 = scalar_lea.vmem %s0, %s329
      %s331 = smul.u32 2, %s22
      %s332 = smul.u32 2, %s22
      %p333 = scmp.lt.s32.totalorder %s332, 5
      %s334 = scalar_select %p333, %s332, 5
      %s335 = smul.addr %s334, 8
      %s336 = scalar_lea.vmem %s9, %s335
      %s337 = smul.u32 2, %s22
      %v338 = vld [vmem:[%s330] sm:$0xff]
      %v339 = vld [vmem:[%s330 + $0x8] sm:$0xff]
      %v340 = vld [vmem:[%s1] sm:$0xff]
      %v341 = vld [vmem:[%s1 + $0x8] sm:$0xff]
      %v342 = vld [vmem:[%s1 + $0x10] sm:$0xff]
      %v343 = vld [vmem:[%s1 + $0x18] sm:$0xff]
      %v344 = vld [vmem:[%s2] sm:$0x1]
      %v346 = vlaneseq
      %v347 = vshrl.u32 %v346, 7
      %v348 = vsub.s32 0, %v347
      %v349 = vrot.slane %v344, %v348
      %vm351 = vcmask 261120
      %v353 = vsel %vm351, %v338, 0
      %v356 = vsel %vm351, %v339, 0
      %358 = vmatprep.subr.mxu0 0.0
      %359 = vmatpush1.msra.mxu0 %v340
      %360 = vmatprep.subr.mxu0 0.0
      %361 = vmatpush1.msra.mxu0 %v341
      %362 = vmatprep.subr.mxu0 0.0
      %363 = vmatpush1.msra.mxu0 %v342
      %364 = vmatprep.subr.mxu0 0.0
      %365 = vmatpush1.msra.mxu0 %v343
      %366 = vmatprep.subr.mxu0 0.0
      %367 = vmatpush1.msra.mxu0 0.0
      %368 = vmatprep.subr.mxu0 0.0
      %369 = vmatpush1.msra.mxu0 0.0
      %370 = vmatprep.subr.mxu0 0.0
      %371 = vmatpush1.msra.mxu0 0.0
      %372 = vmatprep.subr.mxu0 0.0
      %373 = vmatpush1.msra.mxu0 0.0
      %374 = vmatprep.subr.mxu0 0.0
      %375 = vmatpush1.msra.mxu0 0.0
      %376 = vmatprep.subr.mxu0 0.0
      %377 = vmatpush1.msra.mxu0 0.0
      %378 = vmatprep.subr.mxu0 0.0
      %379 = vmatpush1.msra.mxu0 0.0
      %380 = vmatprep.subr.mxu0 0.0
      %381 = vmatpush1.msra.mxu0 0.0
      %382 = vmatprep.subr.mxu0 0.0
      %383 = vmatpush1.msra.mxu0 0.0
      %384 = vmatprep.subr.mxu0 0.0
      %385 = vmatpush1.msra.mxu0 0.0
      %386 = vmatprep.subr.mxu0 0.0
      %387 = vmatpush1.msra.mxu0 0.0
      %388 = vmatprep.subr.mxu0 0.0
      %389 = vmatpush1.msra.mxu0 0.0
      %390 = vmatprep.subr.mxu0 0.0
      %391 = vmatpush1.msra.mxu0 0.0
      %392 = vmatprep.subr.mxu0 0.0
      %393 = vmatpush1.msra.mxu0 0.0
      %394 = vmatprep.subr.mxu0 0.0
      %395 = vmatpush1.msra.mxu0 0.0
      %396 = vmatprep.subr.mxu0 0.0
      %397 = vmatpush1.msra.mxu0 0.0
      %398 = vmatprep.subr.mxu0 0.0
      %399 = vmatpush1.msra.mxu0 0.0
      %400 = vmatprep.subr.mxu0 0.0
      %401 = vmatpush1.msra.mxu0 0.0
      %402 = vmatprep.subr.mxu0 0.0
      %403 = vmatpush1.msra.mxu0 0.0
      %404 = vmatprep.subr.mxu0 0.0
      %405 = vmatpush1.msra.mxu0 0.0
      %406 = vmatprep.subr.mxu0 0.0
      %407 = vmatpush1.msra.mxu0 0.0
      %408 = vmatprep.subr.mxu0 0.0
      %409 = vmatpush1.msra.mxu0 0.0
      %410 = vmatprep.subr.mxu0 0.0
      %411 = vmatpush1.msra.mxu0 0.0
      %412 = vmatprep.subr.mxu0 0.0
      %413 = vmatpush1.msra.mxu0 0.0
      %414 = vmatprep.subr.mxu0 0.0
      %415 = vmatpush1.msra.mxu0 0.0
      %416 = vmatprep.subr.mxu0 0.0
      %417 = vmatpush1.msra.mxu0 0.0
      %418 = vmatprep.subr.mxu0 0.0
      %419 = vmatpush1.msra.mxu0 0.0
      %420 = vmatprep.subr.mxu0 0.0
      %421 = vmatpush1.msra.mxu0 0.0
      %422 = vmatprep.mubr.f32.mxu0 0.0
      %423 = vmatmul.mubr.f32.gmra.mrb[0].mxu0 %v353
      %v424 = vpop.f32.mrb[0].mxu0
      %v425 = vadd.f32 %v349, %v424
      %v426 = vpop.f32.mrb[0].mxu0
      %427 = vmatprep.mubr.f32.mxu0 0.0
      %428 = vmatmul.mubr.f32.gmra.mrb[0].mxu0 %v356
      %v429 = vpop.f32.mrb[0].mxu0
      %v430 = vadd.f32 %v349, %v429
      %v431 = vpop.f32.mrb[0].mxu0
      %432 = vdwg.mxu0
      %v433 = vmax.f32 %v425, 0.0
      %v434 = vmax.f32 %v430, 0.0
      %v435 = vld [vmem:[%s3] sm:$0xff]
      %v436 = vld [vmem:[%s3 + $0x8] sm:$0xff]
      %v437 = vld [vmem:[%s3 + $0x10] sm:$0xff]
      %v438 = vld [vmem:[%s3 + $0x18] sm:$0xff]
      %v439 = vld [vmem:[%s3 + $0x20] sm:$0xff]
      %v440 = vld [vmem:[%s3 + $0x28] sm:$0xff]
      %v441 = vld [vmem:[%s3 + $0x30] sm:$0xff]
      %v442 = vld [vmem:[%s3 + $0x38] sm:$0xff]
      %v443 = vld [vmem:[%s4] sm:$0x1]
      %v445 = vlaneseq
      %v446 = vshrl.u32 %v445, 7
      %v447 = vsub.s32 0, %v446
      %v448 = vrot.slane %v443, %v447
      %vm450 = vcmask 523264
      %v452 = vsel %vm450, %v433, 0
      %v455 = vsel %vm450, %v434, 0
      %457 = vmatprep.subr.mxu0 0.0
      %458 = vmatpush1.msra.mxu0 %v435
      %459 = vmatprep.subr.mxu0 0.0
      %460 = vmatpush1.msra.mxu0 %v436
      %461 = vmatprep.subr.mxu0 0.0
      %462 = vmatpush1.msra.mxu0 %v437
      %463 = vmatprep.subr.mxu0 0.0
      %464 = vmatpush1.msra.mxu0 %v438
      %465 = vmatprep.subr.mxu0 0.0
      %466 = vmatpush1.msra.mxu0 %v439
      %467 = vmatprep.subr.mxu0 0.0
      %468 = vmatpush1.msra.mxu0 %v440
      %469 = vmatprep.subr.mxu0 0.0
      %470 = vmatpush1.msra.mxu0 %v441
      %471 = vmatprep.subr.mxu0 0.0
      %472 = vmatpush1.msra.mxu0 %v442
      %473 = vmatprep.subr.mxu0 0.0
      %474 = vmatpush1.msra.mxu0 0.0
      %475 = vmatprep.subr.mxu0 0.0
      %476 = vmatpush1.msra.mxu0 0.0
      %477 = vmatprep.subr.mxu0 0.0
      %478 = vmatpush1.msra.mxu0 0.0
      %479 = vmatprep.subr.mxu0 0.0
      %480 = vmatpush1.msra.mxu0 0.0
      %481 = vmatprep.subr.mxu0 0.0
      %482 = vmatpush1.msra.mxu0 0.0
      %483 = vmatprep.subr.mxu0 0.0
      %484 = vmatpush1.msra.mxu0 0.0
      %485 = vmatprep.subr.mxu0 0.0
      %486 = vmatpush1.msra.mxu0 0.0
      %487 = vmatprep.subr.mxu0 0.0
      %488 = vmatpush1.msra.mxu0 0.0
      %489 = vmatprep.subr.mxu0 0.0
      %490 = vmatpush1.msra.mxu0 0.0
      %491 = vmatprep.subr.mxu0 0.0
      %492 = vmatpush1.msra.mxu0 0.0
      %493 = vmatprep.subr.mxu0 0.0
      %494 = vmatpush1.msra.mxu0 0.0
      %495 = vmatprep.subr.mxu0 0.0
      %496 = vmatpush1.msra.mxu0 0.0
      %497 = vmatprep.subr.mxu0 0.0
      %498 = vmatpush1.msra.mxu0 0.0
      %499 = vmatprep.subr.mxu0 0.0
      %500 = vmatpush1.msra.mxu0 0.0
      %501 = vmatprep.subr.mxu0 0.0
      %502 = vmatpush1.msra.mxu0 0.0
      %503 = vmatprep.subr.mxu0 0.0
      %504 = vmatpush1.msra.mxu0 0.0
      %505 = vmatprep.subr.mxu0 0.0
      %506 = vmatpush1.msra.mxu0 0.0
      %507 = vmatprep.subr.mxu0 0.0
      %508 = vmatpush1.msra.mxu0 0.0
      %509 = vmatprep.subr.mxu0 0.0
      %510 = vmatpush1.msra.mxu0 0.0
      %511 = vmatprep.subr.mxu0 0.0
      %512 = vmatpush1.msra.mxu0 0.0
      %513 = vmatprep.subr.mxu0 0.0
      %514 = vmatpush1.msra.mxu0 0.0
      %515 = vmatprep.subr.mxu0 0.0
      %516 = vmatpush1.msra.mxu0 0.0
      %517 = vmatprep.subr.mxu0 0.0
      %518 = vmatpush1.msra.mxu0 0.0
      %519 = vmatprep.subr.mxu0 0.0
      %520 = vmatpush1.msra.mxu0 0.0
      %521 = vmatprep.mubr.f32.mxu0 0.0
      %522 = vmatmul.mubr.f32.gmra.mrb[0].mxu0 %v452
      %v523 = vpop.f32.mrb[0].mxu0
      %v524 = vadd.f32 %v448, %v523
      %v525 = vpop.f32.mrb[0].mxu0
      %526 = vmatprep.mubr.f32.mxu0 0.0
      %527 = vmatmul.mubr.f32.gmra.mrb[0].mxu0 %v455
      %v528 = vpop.f32.mrb[0].mxu0
      %v529 = vadd.f32 %v448, %v528
      %v530 = vpop.f32.mrb[0].mxu0
      %531 = vdwg.mxu0
      %v532 = vmax.f32 %v524, 0.0
      %v533 = vmax.f32 %v529, 0.0
      %v534 = vld [vmem:[%s5] sm:$0xff]
      %v535 = vld [vmem:[%s5 + $0x8] sm:$0xff]
      %v536 = vld [vmem:[%s5 + $0x10] sm:$0xff]
      %v537 = vld [vmem:[%s5 + $0x18] sm:$0xff]
      %v538 = vld [vmem:[%s6] sm:$0x1]
      %v540 = vlaneseq
      %v541 = vshrl.u32 %v540, 7
      %v542 = vsub.s32 0, %v541
      %v543 = vrot.slane %v538, %v542
      %v546 = vsel %vm351, %v532, 0
      %v549 = vsel %vm351, %v533, 0
      %551 = vmatprep.subr.mxu0 0.0
      %552 = vmatpush1.msra.mxu0 %v534
      %553 = vmatprep.subr.mxu0 0.0
      %554 = vmatpush1.msra.mxu0 %v535
      %555 = vmatprep.subr.mxu0 0.0
      %556 = vmatpush1.msra.mxu0 %v536
      %557 = vmatprep.subr.mxu0 0.0
      %558 = vmatpush1.msra.mxu0 %v537
      %559 = vmatprep.subr.mxu0 0.0
      %560 = vmatpush1.msra.mxu0 0.0
      %561 = vmatprep.subr.mxu0 0.0
      %562 = vmatpush1.msra.mxu0 0.0
      %563 = vmatprep.subr.mxu0 0.0
      %564 = vmatpush1.msra.mxu0 0.0
      %565 = vmatprep.subr.mxu0 0.0
      %566 = vmatpush1.msra.mxu0 0.0
      %567 = vmatprep.subr.mxu0 0.0
      %568 = vmatpush1.msra.mxu0 0.0
      %569 = vmatprep.subr.mxu0 0.0
      %570 = vmatpush1.msra.mxu0 0.0
      %571 = vmatprep.subr.mxu0 0.0
      %572 = vmatpush1.msra.mxu0 0.0
      %573 = vmatprep.subr.mxu0 0.0
      %574 = vmatpush1.msra.mxu0 0.0
      %575 = vmatprep.subr.mxu0 0.0
      %576 = vmatpush1.msra.mxu0 0.0
      %577 = vmatprep.subr.mxu0 0.0
      %578 = vmatpush1.msra.mxu0 0.0
      %579 = vmatprep.subr.mxu0 0.0
      %580 = vmatpush1.msra.mxu0 0.0
      %581 = vmatprep.subr.mxu0 0.0
      %582 = vmatpush1.msra.mxu0 0.0
      %583 = vmatprep.subr.mxu0 0.0
      %584 = vmatpush1.msra.mxu0 0.0
      %585 = vmatprep.subr.mxu0 0.0
      %586 = vmatpush1.msra.mxu0 0.0
      %587 = vmatprep.subr.mxu0 0.0
      %588 = vmatpush1.msra.mxu0 0.0
      %589 = vmatprep.subr.mxu0 0.0
      %590 = vmatpush1.msra.mxu0 0.0
      %591 = vmatprep.subr.mxu0 0.0
      %592 = vmatpush1.msra.mxu0 0.0
      %593 = vmatprep.subr.mxu0 0.0
      %594 = vmatpush1.msra.mxu0 0.0
      %595 = vmatprep.subr.mxu0 0.0
      %596 = vmatpush1.msra.mxu0 0.0
      %597 = vmatprep.subr.mxu0 0.0
      %598 = vmatpush1.msra.mxu0 0.0
      %599 = vmatprep.subr.mxu0 0.0
      %600 = vmatpush1.msra.mxu0 0.0
      %601 = vmatprep.subr.mxu0 0.0
      %602 = vmatpush1.msra.mxu0 0.0
      %603 = vmatprep.subr.mxu0 0.0
      %604 = vmatpush1.msra.mxu0 0.0
      %605 = vmatprep.subr.mxu0 0.0
      %606 = vmatpush1.msra.mxu0 0.0
      %607 = vmatprep.subr.mxu0 0.0
      %608 = vmatpush1.msra.mxu0 0.0
      %609 = vmatprep.subr.mxu0 0.0
      %610 = vmatpush1.msra.mxu0 0.0
      %611 = vmatprep.subr.mxu0 0.0
      %612 = vmatpush1.msra.mxu0 0.0
      %613 = vmatprep.subr.mxu0 0.0
      %614 = vmatpush1.msra.mxu0 0.0
      %615 = vmatprep.mubr.f32.mxu0 0.0
      %616 = vmatmul.mubr.f32.gmra.mrb[0].mxu0 %v546
      %v617 = vpop.f32.mrb[0].mxu0
      %v618 = vadd.f32 %v543, %v617
      %v619 = vpop.f32.mrb[0].mxu0
      %620 = vmatprep.mubr.f32.mxu0 0.0
      %621 = vmatmul.mubr.f32.gmra.mrb[0].mxu0 %v549
      %v622 = vpop.f32.mrb[0].mxu0
      %v623 = vadd.f32 %v543, %v622
      %v624 = vpop.f32.mrb[0].mxu0
      %625 = vdwg.mxu0
      %v626 = vmax.f32 %v618, 0.0
      %v627 = vmax.f32 %v623, 0.0
      %v628 = vld [vmem:[%s7] sm:$0xff]
      %v629 = vld [vmem:[%s7 + $0x8] sm:$0xff]
      %v630 = vld [vmem:[#allocation2] sm:$0x1]
      %v632 = vlaneseq
      %v633 = vshrl.u32 %v632, 7
      %v634 = vsub.s32 0, %v633
      %v635 = vrot.slane %v630, %v634
      %vm637 = vcmask 130048
      %v639 = vsel %vm637, %v626, 0
      %v642 = vsel %vm637, %v627, 0
      %644 = vmatprep.subr.mxu0 0.0
      %645 = vmatpush1.msra.mxu0 %v628
      %646 = vmatprep.subr.mxu0 0.0
      %647 = vmatpush1.msra.mxu0 %v629
      %648 = vmatprep.subr.mxu0 0.0
      %649 = vmatpush1.msra.mxu0 0.0
      %650 = vmatprep.subr.mxu0 0.0
      %651 = vmatpush1.msra.mxu0 0.0
      %652 = vmatprep.subr.mxu0 0.0
      %653 = vmatpush1.msra.mxu0 0.0
      %654 = vmatprep.subr.mxu0 0.0
      %655 = vmatpush1.msra.mxu0 0.0
      %656 = vmatprep.subr.mxu0 0.0
      %657 = vmatpush1.msra.mxu0 0.0
      %658 = vmatprep.subr.mxu0 0.0
      %659 = vmatpush1.msra.mxu0 0.0
      %660 = vmatprep.subr.mxu0 0.0
      %661 = vmatpush1.msra.mxu0 0.0
      %662 = vmatprep.subr.mxu0 0.0
      %663 = vmatpush1.msra.mxu0 0.0
      %664 = vmatprep.subr.mxu0 0.0
      %665 = vmatpush1.msra.mxu0 0.0
      %666 = vmatprep.subr.mxu0 0.0
      %667 = vmatpush1.msra.mxu0 0.0
      %668 = vmatprep.subr.mxu0 0.0
      %669 = vmatpush1.msra.mxu0 0.0
      %670 = vmatprep.subr.mxu0 0.0
      %671 = vmatpush1.msra.mxu0 0.0
      %672 = vmatprep.subr.mxu0 0.0
      %673 = vmatpush1.msra.mxu0 0.0
      %674 = vmatprep.subr.mxu0 0.0
      %675 = vmatpush1.msra.mxu0 0.0
      %676 = vmatprep.subr.mxu0 0.0
      %677 = vmatpush1.msra.mxu0 0.0
      %678 = vmatprep.subr.mxu0 0.0
      %679 = vmatpush1.msra.mxu0 0.0
      %680 = vmatprep.subr.mxu0 0.0
      %681 = vmatpush1.msra.mxu0 0.0
      %682 = vmatprep.subr.mxu0 0.0
      %683 = vmatpush1.msra.mxu0 0.0
      %684 = vmatprep.subr.mxu0 0.0
      %685 = vmatpush1.msra.mxu0 0.0
      %686 = vmatprep.subr.mxu0 0.0
      %687 = vmatpush1.msra.mxu0 0.0
      %688 = vmatprep.subr.mxu0 0.0
      %689 = vmatpush1.msra.mxu0 0.0
      %690 = vmatprep.subr.mxu0 0.0
      %691 = vmatpush1.msra.mxu0 0.0
      %692 = vmatprep.subr.mxu0 0.0
      %693 = vmatpush1.msra.mxu0 0.0
      %694 = vmatprep.subr.mxu0 0.0
      %695 = vmatpush1.msra.mxu0 0.0
      %696 = vmatprep.subr.mxu0 0.0
      %697 = vmatpush1.msra.mxu0 0.0
      %698 = vmatprep.subr.mxu0 0.0
      %699 = vmatpush1.msra.mxu0 0.0
      %700 = vmatprep.subr.mxu0 0.0
      %701 = vmatpush1.msra.mxu0 0.0
      %702 = vmatprep.subr.mxu0 0.0
      %703 = vmatpush1.msra.mxu0 0.0
      %704 = vmatprep.subr.mxu0 0.0
      %705 = vmatpush1.msra.mxu0 0.0
      %706 = vmatprep.subr.mxu0 0.0
      %707 = vmatpush1.msra.mxu0 0.0
      %708 = vmatprep.mubr.f32.mxu0 0.0
      %709 = vmatmul.mubr.f32.gmra.mrb[0].mxu0 %v639
      %v710 = vpop.f32.mrb[0].mxu0
      %v711 = vadd.f32 %v635, %v710
      %v712 = vpop.f32.mrb[0].mxu0
      %713 = vmatprep.mubr.f32.mxu0 0.0
      %714 = vmatmul.mubr.f32.gmra.mrb[0].mxu0 %v642
      %v715 = vpop.f32.mrb[0].mxu0
      %v716 = vadd.f32 %v635, %v715
      %v717 = vpop.f32.mrb[0].mxu0
      %718 = vdwg.mxu0
      %vm719 = vcmask 7168
      %720 = vst.msk [vmem:[%s336] sm:$0xff] %vm719, %v711
      %721 = vst.msk [vmem:[%s336 + $0x8] sm:$0xff] %vm719, %v716
      %s722 = smul.u32 2, %s22
      %p723 = scmp.lt.s32.totalorder %s722, 5
      %s724 = scalar_select %p723, %s722, 5
      %s725 = smul.addr %s724, 8
      %s726 = scalar_lea.vmem %s9, %s725
      // Predicated region
      $region57: #{tpu_custom_call.1} parent=55 // pred_check
        %p727 = pneg %p234
      $region58: #{tpu_custom_call.1} parent=55 // pred_check_branch
        %729 = sbr.rel (%p727) target = $region60
      $region59: #{tpu_custom_call.1} parent=55 // pred_region
        %s730 = smul.u32 2, %s22
      $region60: #{tpu_custom_call.1} parent=55 // pred_fallthru
        _
    $region56: #{tpu_custom_call.1} parent=5 // pred_fallthru
      _
    %p731 = scmp.le.s32.totalorder 2, %s17
    // Predicated region
    $region61: #{tpu_custom_call.1} parent=5 // pred_check
      %p732 = pneg %p731
    $region62: #{tpu_custom_call.1} parent=5 // pred_check_branch
      %734 = sbr.rel (%p732) target = $region64
    $region63: #{tpu_custom_call.1} parent=5 // pred_region
      %s735 = ssub.s32 %s17, 2
      // Predicated region
      $region65: #{tpu_custom_call.1} parent=63 // pred_check
        %p736 = pneg %p240
      $region66: #{tpu_custom_call.1} parent=63 // pred_check_branch
        %738 = sbr.rel (%p736) target = $region68
      $region67: #{tpu_custom_call.1} parent=63 // pred_region
        %s739 = smul.u32 2, %s23
        %p740 = scmp.lt.s32.totalorder %s739, 5
        %s741 = scalar_select %p740, %s739, 5
        %s742 = smul.addr %s741, 8
        %s743 = scalar_lea.vmem %s9, %s742
      $region68: #{tpu_custom_call.1} parent=63 // pred_fallthru
        _
    $region64: #{tpu_custom_call.1} parent=5 // pred_fallthru
      _
  $region6: #{tpu_custom_call.1} parent=0 // loop_footer
    %s21 = sadd.s32 1, %s17
  $region7: #{tpu_custom_call.1} parent=0 // loop_footer_branch
    %16 = sbr.rel target = $region3
  $region8: #{tpu_custom_call.1} parent=0 // loop_exit
    _

</llo_original>
